<compile_context>
chip_gen: v5e
topology: v5e:2x2
jax: 0.10.0
libtpu: 0.0.40
codegen_flags: <defaults>
</compile_context>

<pallas_src>
import functools

import jax
import jax.numpy as jnp
from jax.experimental import pallas as pl
from jax.experimental.pallas import tpu as pltpu


# Defaults from the PyTorch module (query_kwargs fallbacks).
_INTERVALS = ((0.185, 0.375),)
_ALPHA = 0.0125
_MODE = 0


def _smooth_intervals_kernel(x_ref, o_ref, *, intervals, alpha, mode):
    x = x_ref[...].astype(jnp.float32)
    scale = 4.0 / alpha
    xp = x * scale  # hoisted: one VALU mul per element per block
    acc = None
    # Static unroll over the (usually single) interval list.
    for lo, hi in intervals:
        # s_lo * (1 - s_hi) = 1 / ((1 + e_lo) * (1 + e_hi)); the two exps cannot
        # both overflow (lo < hi), and inf in the denominator correctly gives 0.
        e_lo = jnp.exp((scale * lo) - xp)   # exp(-scale*(x - lo)), single add arg
        e_hi = jnp.exp(xp - (scale * hi))   # exp( scale*(x - hi)), single add arg
        term = 1.0 / ((1.0 + e_lo) * (1.0 + e_hi))
        acc = term if acc is None else acc + term
    if acc is None:  # degenerate empty-intervals case
        acc = jnp.zeros_like(x)
    if mode:
        acc = acc * 2.0 - 1.0
    o_ref[...] = acc.astype(o_ref.dtype)


def _smooth_intervals_jnp(x, intervals, alpha, mode):
    # Plain-jnp path for tiny arrays / <128-element remainders (same fused math).
    xf = x.astype(jnp.float32)
    scale = 4.0 / alpha
    xp = xf * scale
    acc = None
    for lo, hi in intervals:
        term = 1.0 / ((1.0 + jnp.exp(scale * lo - xp)) * (1.0 + jnp.exp(xp - scale * hi)))
        acc = term if acc is None else acc + term
    if acc is None:
        acc = jnp.zeros_like(xf)
    if mode:
        acc = acc * 2.0 - 1.0
    return acc.astype(x.dtype)


def _pick_width(n):
    # Largest lane-dense width (multiple of 128) that divides n exactly so the
    # 2-D view is a copy-free reshape (no zero-pad, no post-slice).
    for w in (8192, 4096, 2048, 1024, 512, 256, 128):
        if n % w == 0:
            return w
    return None


def _run_pallas(slab, kernel, n_intervals, donate):
    rows, cols = slab.shape
    dtype = slab.dtype
    itemsize = dtype.itemsize
    # Sublane packing multiple: 8 for 32-bit, 16 for 16-bit, 32 for 8-bit dtypes.
    sublane_mult = max(8, 32 // itemsize)

    # ~4 MiB per buffer: in+out double-buffered = ~16 MiB, well inside the
    # 48 MiB scoped-VMEM limit below on every generation (incl. v7x 64 MiB phys).
    bytes_per_row = cols * itemsize
    block_budget = 4 * 1024 * 1024
    max_block_rows = max(sublane_mult, block_budget // max(bytes_per_row, 1))
    block_rows = min(rows, max_block_rows)

    # Guarantee >= 2 grid steps when rows allow, so ("parallel",) can shard the
    # grid across both v7x TensorCores instead of collapsing to a single block.
    if block_rows >= rows and rows >= 2 * sublane_mult:
        block_rows = pl.cdiv(rows, 2)

    if block_rows >= sublane_mult:
        block_rows = (block_rows // sublane_mult) * sublane_mult  # packed tiles
    grid = (pl.cdiv(rows, block_rows),)  # cdiv grid: Pallas masks the ragged tail

    n_elems = rows * cols
    cost = pl.CostEstimate(
        flops=8 * n_elems * n_intervals,
        transcendentals=2 * n_elems * n_intervals,
        bytes_accessed=2 * n_elems * itemsize,
    )

    return pl.pallas_call(
        kernel,
        out_shape=jax.ShapeDtypeStruct((rows, cols), dtype),
        grid=grid,
        in_specs=[pl.BlockSpec((block_rows, cols), lambda i: (i, 0))],
        out_specs=pl.BlockSpec((block_rows, cols), lambda i: (i, 0)),
        compiler_params=pltpu.CompilerParams(
            dimension_semantics=("parallel",),
            vmem_limit_bytes=48 * 1024 * 1024,
        ),
        cost_estimate=cost,
        input_output_aliases={0: 0} if donate else {},
    )(slab)


def smooth_intervals(x, intervals=_INTERVALS, alpha=_ALPHA, mode=_MODE, donate=False):
    orig_shape = x.shape
    n = x.size
    if n == 0:
        return x

    intervals = tuple(tuple(float(v) for v in b) for b in intervals)
    alpha = float(alpha)
    mode = int(mode)

    kernel = functools.partial(
        _smooth_intervals_kernel, intervals=intervals, alpha=alpha, mode=mode
    )

    width = _pick_width(n)
    if width is not None:
        # Copy-free reshape to a lane-dense slab.
        slab = x.reshape(n // width, width)
        out = _run_pallas(slab, kernel, len(intervals), donate)
        return out.reshape(orig_shape)

    # Size not divisible by 128: bulk (multiple of 128) through the lane-dense
    # kernel, remainder (<128 elems) with plain jnp — avoids lane-sparse stores
    # and untiled-cols VMEM blowups.
    flat = x.reshape(-1)
    n_bulk = (n // 128) * 128
    if n_bulk == 0:
        return _smooth_intervals_jnp(x, intervals, alpha, mode)
    bulk_width = _pick_width(n_bulk)  # guaranteed >= 128
    bulk = flat[:n_bulk].reshape(n_bulk // bulk_width, bulk_width)
    bulk_out = _run_pallas(bulk, kernel, len(intervals), donate=False).reshape(-1)
    tail_out = _smooth_intervals_jnp(flat[n_bulk:], intervals, alpha, mode)
    return jnp.concatenate([bulk_out, tail_out]).reshape(orig_shape)


def _reference(x, intervals=_INTERVALS, alpha=_ALPHA, mode=_MODE):
    # Literal transcription of the PyTorch forward (unfused), for validation.
    xf = x.astype(jnp.float32)
    res = jnp.zeros_like(xf)
    for lo, hi in intervals:
        s_lo = 1.0 / (1.0 + jnp.exp(-4.0 * (xf - lo) / alpha))
        s_hi = 1.0 / (1.0 + jnp.exp(-4.0 * (xf - hi) / alpha))
        res = res + s_lo * (1.0 - s_hi)
    if mode:
        res = res * 2.0 - 1.0
    return res.astype(x.dtype)


if __name__ == "__main__":
    key = jax.random.PRNGKey(0)
    k1, k2 = jax.random.split(key)

    # NCHW input, small shape: batch=2, channels=4, spatial=16x16.
    # Center values near the [0.185, 0.375] interval so the output is nontrivial.
    x = jax.random.normal(k1, (2, 4, 16, 16), dtype=jnp.float32) * 0.25 + 0.28
    y = jax.block_until_ready(smooth_intervals(x))
    y_ref = _reference(x)
    assert y.shape == x.shape and y.dtype == x.dtype
    assert bool(jnp.allclose(y, y_ref, atol=1e-5, rtol=1e-5))

    # Odd size (not a multiple of 128) exercises the bulk + jnp-tail path,
    # plus mode=1 output remapping.
    x2 = jax.random.normal(k2, (300,), dtype=jnp.float32) * 0.25 + 0.28
    y2 = jax.block_until_ready(smooth_intervals(x2, mode=1))
    y2_ref = _reference(x2, mode=1)
    assert y2.shape == x2.shape and y2.dtype == x2.dtype
    assert bool(jnp.allclose(y2, y2_ref, atol=1e-5, rtol=1e-5))

    print("KERNEL_OK")
</pallas_src>

<mosaic_0001>
module attributes {stable_mosaic.version = 11 : i64} {
  func.func @_smooth_intervals_kernel(%arg0: i32, %arg1: memref<1x2048xf32, #tpu.memory_space<vmem>>, %arg2: memref<1x2048xf32, #tpu.memory_space<vmem>>) attributes {dimension_semantics = [#tpu.dimension_semantics<parallel>], iteration_bounds = array<i64: 1>, scalar_prefetch = 0 : i64, scratch_operands = 0 : i64, tpu.core_type = #tpu.core_type<tc>, window_params = [{transform_indices = @transform_0, window_bounds = array<i64: 1, 2048>}, {transform_indices = @transform_1, window_bounds = array<i64: 1, 2048>}]} {
    %c0 = arith.constant 0 : index
    %c0_0 = arith.constant 0 : index
    %0 = vector.load %arg1[%c0, %c0_0] : memref<1x2048xf32, #tpu.memory_space<vmem>>, vector<1x2048xf32>
    %cst = arith.constant 3.200000e+02 : f32
    %1 = vector.broadcast %cst : f32 to vector<1x2048xf32>
    %2 = arith.mulf %0, %1 : vector<1x2048xf32>
    %cst_1 = arith.constant 5.920000e+01 : f32
    %3 = vector.broadcast %cst_1 : f32 to vector<1x2048xf32>
    %4 = arith.subf %3, %2 : vector<1x2048xf32>
    %5 = math.exp %4 : vector<1x2048xf32>
    %cst_2 = arith.constant 1.200000e+02 : f32
    %6 = vector.broadcast %cst_2 : f32 to vector<1x2048xf32>
    %7 = arith.subf %2, %6 : vector<1x2048xf32>
    %8 = math.exp %7 : vector<1x2048xf32>
    %cst_3 = arith.constant 1.000000e+00 : f32
    %9 = vector.broadcast %cst_3 : f32 to vector<1x2048xf32>
    %10 = arith.addf %9, %5 : vector<1x2048xf32>
    %cst_4 = arith.constant 1.000000e+00 : f32
    %11 = vector.broadcast %cst_4 : f32 to vector<1x2048xf32>
    %12 = arith.addf %11, %8 : vector<1x2048xf32>
    %13 = arith.mulf %10, %12 : vector<1x2048xf32>
    %cst_5 = arith.constant 1.000000e+00 : f32
    %14 = vector.broadcast %cst_5 : f32 to vector<1x2048xf32>
    %15 = arith.divf %14, %13 : vector<1x2048xf32>
    %c0_6 = arith.constant 0 : index
    %c0_7 = arith.constant 0 : index
    %16 = vector.load %arg2[%c0_6, %c0_7] : memref<1x2048xf32, #tpu.memory_space<vmem>>, vector<1x2048xf32>
    tpu.vector_store %arg2[%c0_6, %c0_7], %15 {strides = array<i32>} : memref<1x2048xf32, #tpu.memory_space<vmem>>, vector<1x2048xf32>,
    return
  }
  func.func @transform_0(%arg0: i32) -> (i32, i32) {
    %c0_i32 = arith.constant 0 : i32
    %c0_i32_0 = arith.constant 0 : i32
    return %arg0, %c0_i32 : i32, i32
  }
  func.func @transform_1(%arg0: i32) -> (i32, i32) {
    %c0_i32 = arith.constant 0 : i32
    %c0_i32_0 = arith.constant 0 : i32
    return %arg0, %c0_i32 : i32, i32
  }
}

</mosaic_0001>

<llo_original>
// kernel: tpu_custom_call.1
$region0: #{tpu_custom_call.1}
  #allocation0 [shape = 'u32[]', space=smem, size = 0x4, offset = 0x4, fixed_abs, tag = 'smem constant byte address 0x4 - core index']
  #allocation1 [shape = 'u32[72,128]{1,0:T(1,128)}', space=vmem, size = 0x9000, scoped, tag = 'internal scratch']
  %s0 = inlined_call_operand.hbm [shape: f32[1,2048], index: 0, kind: input, shape index: {}]
  %s1 = inlined_call_operand.hbm [shape: f32[1,2048], index: 1, kind: output, shape index: {}]
  %s2 = sld [smem:[#allocation0]]
  $region18: #{tpu_custom_call.1} parent=0
    _
  %s4 = ssub.s32 1, %s2
  %s5 = scalar_select 0, %s4, %s2
  $region1: #{tpu_custom_call.1} parent=0
    #allocation2 [shape = 'u8[8192]{0}', space=vmem, size = 0x2000, scoped, tag = 'input window, operand 0, single buffered']
    #allocation3 [shape = 's32[1]{0}', space=sflag, size = 0x4, scoped, tag = 'scoped memory for tpu_custom_call.1']
    #allocation4 [shape = 's32[1]{0}', space=sflag, size = 0x4, scoped, tag = 'scoped memory for tpu_custom_call.1']
    #allocation5 [shape = 'u8[8192]{0}', space=vmem, size = 0x2000, scoped, tag = 'output window, operand 0, single buffered']
    %6 = vsyncpa [#allocation3], 0
    %7 = vsyncpa [#allocation4], 0
    // Predicated region
    $region2: #{tpu_custom_call.1} parent=1 // pred_check
      _
    $region3: #{tpu_custom_call.1} parent=1 // pred_check_branch
      %9 = sbr.rel (0) target = $region5
    $region4: #{tpu_custom_call.1} parent=1 // pred_region
      %11 = vsyncadd [#allocation3], 0
      %s13 = sshll.u32 %s0, 4
      %s14 = int_to_ptr.hbm [resolvable:$true] %s13
      %s15 = sshll.u32 [#allocation2], 4
      %s16 = int_to_ptr.vmem [resolvable:$true] %s15
      %18 = dma.hbm_to_vmem [thread:$0]  %s14, 256, %s16, [#allocation3]
    $region5: #{tpu_custom_call.1} parent=1 // pred_fallthru
      _
    // Predicated region
    $region6: #{tpu_custom_call.1} parent=1 // pred_check
      _
    $region7: #{tpu_custom_call.1} parent=1 // pred_check_branch
      %20 = sbr.rel (0) target = $region9
    $region8: #{tpu_custom_call.1} parent=1 // pred_region
      %22 = dma.done [#allocation3], 256
    $region9: #{tpu_custom_call.1} parent=1 // pred_fallthru
      _
    %v23 = vld [vmem:[#allocation2] sm:$0xff]
    %v24 = vld [vmem:[#allocation2 + $0x8] sm:$0xff]
    %v25 = vmul.f32 %v23, 320.0
    %v26 = vmul.f32 %v24, 320.0
    %v27 = vsub.f32 59.2, %v25
    %v28 = vsub.f32 59.2, %v26
    %v29 = vmul.f32 %v27, 1.442695
    %v30 = vpow.pop %v29
    %v31 = vmul.f32 %v28, 1.442695
    %v32 = vpow.pop %v31
    %v33 = vsub.f32 %v25, 120.0
    %v34 = vsub.f32 %v26, 120.0
    %v35 = vmul.f32 %v33, 1.442695
    %v36 = vpow.pop %v35
    %v37 = vmul.f32 %v34, 1.442695
    %v38 = vpow.pop %v37
    %v39 = vadd.f32 %v30, 1.0
    %v40 = vadd.f32 %v32, 1.0
    %v41 = vadd.f32 %v36, 1.0
    %v42 = vadd.f32 %v38, 1.0
    %v43 = vmul.f32 %v39, %v41
    %v44 = vmul.f32 %v40, %v42
    %v45 = vrcp.pop %v43
    %v46 = vmul.f32 %v43, %v45
    %v47 = vsub.f32 1.0, %v46
    %v48 = vmul.f32 %v45, %v47
    %v49 = vadd.f32 %v45, %v48
    %vm50 = vweird.f32 %v43
    %vm51 = vweird.f32 %v45
    %vm52 = vmor %vm50, %vm51
    %v53 = vsel %vm52, %v45, %v49
    %v54 = vand.u32 2147483647, %v43
    %vm55 = vcmp.eq.f32.partialorder %v54, 8.507059e+37
    %v56 = vand.u32 %v43, 2147483648
    %v57 = vor.u32 1.1754944e-38, %v56
    %v58 = vsel %vm55, %v57, %v53
    %v59 = vmul.f32 1.0, %v58
    %v60 = vrcp.pop %v44
    %v61 = vmul.f32 %v44, %v60
    %v62 = vsub.f32 1.0, %v61
    %v63 = vmul.f32 %v60, %v62
    %v64 = vadd.f32 %v60, %v63
    %vm65 = vweird.f32 %v44
    %vm66 = vweird.f32 %v60
    %vm67 = vmor %vm65, %vm66
    %v68 = vsel %vm67, %v60, %v64
    %v69 = vand.u32 2147483647, %v44
    %vm70 = vcmp.eq.f32.partialorder %v69, 8.507059e+37
    %v71 = vand.u32 %v44, 2147483648
    %v72 = vor.u32 1.1754944e-38, %v71
    %v73 = vsel %vm70, %v72, %v68
    %v74 = vmul.f32 1.0, %v73
    %75 = vst [vmem:[#allocation5] sm:$0xff] %v59
    %76 = vst [vmem:[#allocation5 + $0x8] sm:$0xff] %v74
    // Predicated region
    $region10: #{tpu_custom_call.1} parent=1 // pred_check
      _
    $region11: #{tpu_custom_call.1} parent=1 // pred_check_branch
      %78 = sbr.rel (0) target = $region13
    $region12: #{tpu_custom_call.1} parent=1 // pred_region
      %80 = vsyncadd [#allocation4], 0
      %s82 = sshll.u32 [#allocation5], 4
      %s83 = int_to_ptr.vmem [resolvable:$true] %s82
      %s84 = sshll.u32 %s1, 4
      %s85 = int_to_ptr.hbm [resolvable:$true] %s84
      %87 = dma.vmem_to_hbm [thread:$0]  %s83, 256, %s85, [#allocation4]
    $region13: #{tpu_custom_call.1} parent=1 // pred_fallthru
      _
    // Predicated region
    $region14: #{tpu_custom_call.1} parent=1 // pred_check
      _
    $region15: #{tpu_custom_call.1} parent=1 // pred_check_branch
      %89 = sbr.rel (0) target = $region17
    $region16: #{tpu_custom_call.1} parent=1 // pred_region
      %91 = dma.done [#allocation4], 256
    $region17: #{tpu_custom_call.1} parent=1 // pred_fallthru
      _
    %92 = vsyncpa [#allocation3], 1
    %93 = vsyncpa [#allocation4], 1

</llo_original>
